<compile_context>
chip_gen: v6e
topology: v6e:2x2x1
jax: 0.10.0
libtpu: 0.0.40
codegen_flags: <defaults>
</compile_context>

<pallas_src>
import jax
import jax.numpy as jnp
from jax.experimental import pallas as pl
from jax.experimental.pallas import tpu as pltpu

# Problem sizes (small, consistent with a conv backbone + classifier head).
B = 2          # batch
CIN = 4        # input channels
H = W = 16     # spatial
COUT = 32      # conv output channels
NC = 8         # classifier classes
KH = KW = 3    # conv kernel

HW = H * W                  # 256 spatial positions per batch element
M = B * HW                  # 512 rows of the im2col patch matrix
K_RAW = KH * KW * CIN + 1   # 36 patch columns + 1 ones-column (folds conv bias)
KP = 128                    # contraction dim padded to lane width
CP = 128                    # conv output channels padded to lane width
NP = 128                    # logits padded to lane width
OSUB = 8                    # output sublane padding (full (8,128) tile store)


def _model_kernel(p_ref, wc_ref, wf_ref, bf_ref, o_ref):
    """One batch element per grid step.

    p_ref : (HW, KP)     bf16 im2col patches (+ ones col for conv bias) of batch b
    wc_ref: (KP, CP)     bf16 flattened conv weight (+ bias row), zero-padded
    wf_ref: (CP, NP)     bf16 fc weight, zero-padded
    bf_ref: (1, NP)      f32 fc bias, zero-padded
    o_ref : (1, OSUB,NP) f32 lane-dense logits tile (row 0 / first NC cols valid)
    """
    # conv3x3 + bias as one lane-dense bf16 MXU matmul, f32 accumulation.
    acc = jnp.dot(p_ref[...], wc_ref[...], preferred_element_type=jnp.float32)
    acc = jnp.maximum(acc, 0.0)                       # ReLU (VPU), (HW, CP) f32

    # global average pool: single tile-aligned sublane reduction (no concat).
    pooled = jnp.sum(acc, axis=0, keepdims=True) * (1.0 / HW)   # (1, CP) f32

    # classifier head (tiny MXU matmul, f32 accumulation).
    logits = jnp.dot(pooled.astype(jnp.bfloat16), wf_ref[...],
                     preferred_element_type=jnp.float32) + bf_ref[...]  # (1, NP)

    # full unmasked (8,128) tile store (logits broadcast over sublanes).
    o_ref[0] = jnp.broadcast_to(logits, (OSUB, NP))


@jax.jit
def model_forward(x_nchw, w_conv, b_conv, w_fc, b_fc):
    """x_nchw: (B, CIN, H, W) float32 -> logits (B, NC) float32."""
    # NCHW -> NHWC, zero-pad H/W by 1 (3x3 conv, stride 1, 'SAME' padding).
    x_nhwc = jnp.transpose(x_nchw, (0, 2, 3, 1))
    x_pad = jnp.pad(x_nhwc, ((0, 0), (1, 1), (1, 1), (0, 0)))

    # im2col (fused into the jitted wrapper): (B*H*W, KH*KW*CIN) + ones column
    # (folds conv bias into the matmul), K-padded to the 128-lane width, bf16.
    cols = [x_pad[:, kh:kh + H, kw:kw + W, :].reshape(M, CIN)
            for kh in range(KH) for kw in range(KW)]
    patches = jnp.concatenate(cols + [jnp.ones((M, 1), jnp.float32)], axis=1)
    patches = jnp.pad(patches, ((0, 0), (0, KP - K_RAW)))
    patches = patches.astype(jnp.bfloat16)                        # (512, 128)

    # conv weight flattened to (KH*KW*CIN, COUT) with a bias row appended,
    # zero-padded to a lane-dense (128, 128) tile, bf16.
    wc = jnp.concatenate(
        [w_conv.reshape(KH * KW * CIN, COUT), b_conv.reshape(1, COUT)], axis=0)
    wc = jnp.pad(wc, ((0, KP - K_RAW), (0, CP - COUT))).astype(jnp.bfloat16)

    # fc weight / bias, zero-padded to lane-dense tiles.
    wf = jnp.pad(w_fc, ((0, CP - COUT), (0, NP - NC))).astype(jnp.bfloat16)
    bf = jnp.pad(b_fc.reshape(1, NC), ((0, 0), (0, NP - NC)))     # (1, 128) f32

    flops = 2 * M * KP * CP + 2 * B * CP * NP
    bytes_accessed = 2 * (M * KP + KP * CP + CP * NP) + 4 * (NP + B * OSUB * NP)

    out = pl.pallas_call(
        _model_kernel,
        out_shape=jax.ShapeDtypeStruct((B, OSUB, NP), jnp.float32),
        grid_spec=pltpu.PrefetchScalarGridSpec(
            num_scalar_prefetch=0,
            grid=(B,),
            in_specs=[
                pl.BlockSpec((HW, KP), lambda b: (b, 0)),   # per-batch patch rows
                pl.BlockSpec((KP, CP), lambda b: (0, 0)),   # shared conv weight
                pl.BlockSpec((CP, NP), lambda b: (0, 0)),   # shared fc weight
                pl.BlockSpec((1, NP), lambda b: (0, 0)),    # shared fc bias
            ],
            out_specs=pl.BlockSpec((1, OSUB, NP), lambda b: (b, 0, 0)),
        ),
        compiler_params=pltpu.CompilerParams(
            dimension_semantics=("parallel",)),   # v7x: one batch element per TC
        cost_estimate=pl.CostEstimate(
            flops=flops, transcendentals=0, bytes_accessed=bytes_accessed),
    )(patches, wc, wf, bf)

    return out[:, 0, :NC]


if __name__ == "__main__":
    key = jax.random.PRNGKey(0)
    kx, kw1, kb1, kw2, kb2 = jax.random.split(key, 5)

    # Deterministic synthetic parameters (shapes from the stand-in sub-model).
    x = jax.random.normal(kx, (B, CIN, H, W), dtype=jnp.float32)
    w_conv = jax.random.normal(kw1, (KH, KW, CIN, COUT), dtype=jnp.float32) * 0.1
    b_conv = jax.random.normal(kb1, (COUT,), dtype=jnp.float32) * 0.1
    w_fc = jax.random.normal(kw2, (COUT, NC), dtype=jnp.float32) * 0.1
    b_fc = jax.random.normal(kb2, (NC,), dtype=jnp.float32) * 0.1

    out = model_forward(x, w_conv, b_conv, w_fc, b_fc)
    jax.block_until_ready(out)

    # Cross-check against a pure-JAX f32 reference of the same stand-in model
    # (tolerance loosened for the bf16 MXU operands).
    x_nhwc = jnp.transpose(x, (0, 2, 3, 1))
    ref_conv = jax.lax.conv_general_dilated(
        x_nhwc, w_conv, window_strides=(1, 1), padding="SAME",
        dimension_numbers=("NHWC", "HWIO", "NHWC"))
    ref = jnp.maximum(ref_conv + b_conv, 0.0).mean(axis=(1, 2)) @ w_fc + b_fc
    assert jnp.allclose(out, ref, atol=2e-2, rtol=2e-2), "mismatch vs reference"

    print("KERNEL_OK")
</pallas_src>

<mosaic_0001>
module attributes {stable_mosaic.version = 11 : i64} {
  func.func @_model_kernel(%arg0: i32, %arg1: memref<256x128xbf16, #tpu.memory_space<vmem>>, %arg2: memref<128x128xbf16, #tpu.memory_space<vmem>>, %arg3: memref<128x128xbf16, #tpu.memory_space<vmem>>, %arg4: memref<1x128xf32, #tpu.memory_space<vmem>>, %arg5: memref<1x8x128xf32, #tpu.memory_space<vmem>>) attributes {dimension_semantics = [#tpu.dimension_semantics<parallel>], iteration_bounds = array<i64: 2>, scalar_prefetch = 0 : i64, scratch_operands = 0 : i64, tpu.core_type = #tpu.core_type<tc>, window_params = [{transform_indices = @transform_0, window_bounds = array<i64: 256, 128>}, {pipeline_mode = #tpu.pipeline_mode<synchronous>, transform_indices = @transform_1, window_bounds = array<i64: 128, 128>}, {pipeline_mode = #tpu.pipeline_mode<synchronous>, transform_indices = @transform_2, window_bounds = array<i64: 128, 128>}, {pipeline_mode = #tpu.pipeline_mode<synchronous>, transform_indices = @transform_3, window_bounds = array<i64: 1, 128>}, {transform_indices = @transform_4, window_bounds = array<i64: 1, 8, 128>}]} {
    %c0 = arith.constant 0 : index
    %c0_0 = arith.constant 0 : index
    %0 = vector.load %arg1[%c0, %c0_0] : memref<256x128xbf16, #tpu.memory_space<vmem>>, vector<256x128xbf16>
    %c0_1 = arith.constant 0 : index
    %c0_2 = arith.constant 0 : index
    %1 = vector.load %arg2[%c0_1, %c0_2] : memref<128x128xbf16, #tpu.memory_space<vmem>>, vector<128x128xbf16>
    %cst = arith.constant dense<0.000000e+00> : vector<256x128xf32>
    %2 = tpu.matmul %0, %1, %cst {dimension_numbers = #tpu.dot_dimension_numbers<[1], [0], [0], [1], [0, 0, 1, 1], [], []>} : vector<256x128xbf16>, vector<128x128xbf16>, vector<256x128xf32> -> vector<256x128xf32>
    %cst_3 = arith.constant 0.000000e+00 : f32
    %3 = vector.broadcast %cst_3 : f32 to vector<256x128xf32>
    %4 = arith.maximumf %2, %3 : vector<256x128xf32>
    %cst_4 = arith.constant dense<0.000000e+00> : vector<128xf32>
    %5 = vector.multi_reduction <add>, %4, %cst_4 [0] : vector<256x128xf32> to vector<128xf32>
    %6 = vector.shape_cast %5 : vector<128xf32> to vector<1x128xf32>
    %cst_5 = arith.constant 3.906250e-03 : f32
    %7 = vector.broadcast %cst_5 : f32 to vector<1x128xf32>
    %8 = arith.mulf %6, %7 : vector<1x128xf32>
    %9 = arith.truncf %8 : vector<1x128xf32> to vector<1x128xbf16>
    %c0_6 = arith.constant 0 : index
    %c0_7 = arith.constant 0 : index
    %10 = vector.load %arg3[%c0_6, %c0_7] : memref<128x128xbf16, #tpu.memory_space<vmem>>, vector<128x128xbf16>
    %cst_8 = arith.constant dense<0.000000e+00> : vector<1x128xf32>
    %11 = tpu.matmul %9, %10, %cst_8 {dimension_numbers = #tpu.dot_dimension_numbers<[1], [0], [0], [1], [0, 0, 1, 1], [], []>} : vector<1x128xbf16>, vector<128x128xbf16>, vector<1x128xf32> -> vector<1x128xf32>
    %c0_9 = arith.constant 0 : index
    %c0_10 = arith.constant 0 : index
    %12 = vector.load %arg4[%c0_9, %c0_10] : memref<1x128xf32, #tpu.memory_space<vmem>>, vector<1x128xf32>
    %13 = arith.addf %11, %12 : vector<1x128xf32>
    %14 = vector.shape_cast %13 : vector<1x128xf32> to vector<1x128xf32>
    %15 = vector.broadcast %14 : vector<1x128xf32> to vector<8x128xf32>
    %c0_11 = arith.constant 0 : index
    %c0_12 = arith.constant 0 : index
    %c0_13 = arith.constant 0 : index
    %16 = vector.load %arg5[%c0_11, %c0_12, %c0_13] : memref<1x8x128xf32, #tpu.memory_space<vmem>>, vector<1x8x128xf32>
    %17 = vector.shape_cast %16 : vector<1x8x128xf32> to vector<8x128xf32>
    %18 = vector.shape_cast %15 : vector<8x128xf32> to vector<1x8x128xf32>
    tpu.vector_store %arg5[%c0_11, %c0_12, %c0_13], %18 {strides = array<i32>} : memref<1x8x128xf32, #tpu.memory_space<vmem>>, vector<1x8x128xf32>,
    return
  }
  func.func @transform_0(%arg0: i32) -> (i32, i32) {
    %c0_i32 = arith.constant 0 : i32
    %c0_i32_0 = arith.constant 0 : i32
    return %arg0, %c0_i32 : i32, i32
  }
  func.func @transform_1(%arg0: i32) -> (i32, i32) {
    %c0_i32 = arith.constant 0 : i32
    %c0_i32_0 = arith.constant 0 : i32
    %c0_i32_1 = arith.constant 0 : i32
    return %c0_i32, %c0_i32_0 : i32, i32
  }
  func.func @transform_2(%arg0: i32) -> (i32, i32) {
    %c0_i32 = arith.constant 0 : i32
    %c0_i32_0 = arith.constant 0 : i32
    %c0_i32_1 = arith.constant 0 : i32
    return %c0_i32, %c0_i32_0 : i32, i32
  }
  func.func @transform_3(%arg0: i32) -> (i32, i32) {
    %c0_i32 = arith.constant 0 : i32
    %c0_i32_0 = arith.constant 0 : i32
    %c0_i32_1 = arith.constant 0 : i32
    return %c0_i32, %c0_i32_0 : i32, i32
  }
  func.func @transform_4(%arg0: i32) -> (i32, i32, i32) {
    %c0_i32 = arith.constant 0 : i32
    %c0_i32_0 = arith.constant 0 : i32
    %c0_i32_1 = arith.constant 0 : i32
    return %arg0, %c0_i32, %c0_i32_0 : i32, i32, i32
  }
}

</mosaic_0001>

<llo_original>
// kernel: model_forward.1
$region0: #{model_forward.1}
  #allocation0 [shape = 'u32[]', space=smem, size = 0x4, offset = 0x4, fixed_abs, tag = 'smem constant byte address 0x4 - core index']
  #allocation1 [shape = 'u32[144,128]{1,0:T(1,128)}', space=vmem, size = 0x12000, scoped, tag = 'internal scratch']
  %s0 = inlined_call_operand.vmem [shape: bf16[512,128], index: 0, kind: input, shape index: {}]
  %s1 = inlined_call_operand.vmem [shape: bf16[128,128], index: 1, kind: input, shape index: {}]
  %s2 = inlined_call_operand.vmem [shape: bf16[128,128], index: 2, kind: input, shape index: {}]
  %s3 = inlined_call_operand.vmem [shape: f32[1,128], index: 3, kind: input, shape index: {}]
  %s4 = inlined_call_operand.vmem [shape: f32[2,8,128], index: 4, kind: output, shape index: {}]
  %s5 = sld [smem:[#allocation0]]
  $region49: #{model_forward.1} parent=0
    _
  %s7 = ssub.s32 1, %s5
  %s8 = scalar_select 0, %s7, %s5
  loop: start=0, step=1, limit=4
  $region2: #{model_forward.1} parent=0 // loop_pre_header
    _
  $region3: #{model_forward.1} parent=0 // loop_header
    %s10 = sphi 0, %s14
    %p11 = scmp.ge.s32.totalorder %s10, 4
    %s20 = sphi 0, %s22
    %s23 = sphi 0, %s20
    %s24 = sphi 0, %s23
    %s40 = sphi 0, %s24
    %s44 = sphi 0, %s44
    %s46 = sphi 0, %s44
    %s47 = sphi 0, %s46
    %s61 = sphi 0, %s47
    %s65 = sphi 0, %s65
    %s67 = sphi 0, %s65
    %s68 = sphi 0, %s67
    %s82 = sphi 0, %s68
    %s86 = sphi 0, %s86
    %s88 = sphi 0, %s86
    %s89 = sphi 0, %s88
    %s103 = sphi 0, %s89
    %s109 = sphi 0, %s111
    %s112 = sphi 0, %s109
    %s113 = sphi 0, %s112
    %s129 = sphi 0, %s113
  $region4: #{model_forward.1} parent=0 // loop_header_branch
    %13 = sbr.rel (%p11) target = $region8
  $region5: #{model_forward.1} parent=0 // loop_body
    %s15 = ssub.s32 %s10, 1
    %s16 = ssub.s32 %s10, 2
    %s17 = sadd.s32 %s10, 1
    %s18 = ssub.s32 %s10, %s17
    %p19 = scmp.eq.s32.totalorder %s18, 0
    %s21 = sadd.s32 %s20, 1
    %s22 = scalar_select %p19, %s20, %s21
    %p25 = pneg %p19
    %p26 = scmp.eq.s32.totalorder %s10, 1
    %p27 = por %p25, %p26
    %p28 = scmp.ne.s32.totalorder %s20, %s23
    %p29 = scmp.eq.s32.totalorder %s10, 0
    %p30 = por %p28, %p29
    %p31 = scmp.ne.s32.totalorder %s20, %s23
    %p32 = scmp.eq.s32.totalorder %s15, 1
    %p33 = por %p31, %p32
    %p34 = scmp.ne.s32.totalorder %s23, %s24
    %p35 = scmp.eq.s32.totalorder %s15, 0
    %p36 = por %p34, %p35
    %p37 = scmp.ne.s32.totalorder %s23, %s24
    %p38 = scmp.eq.s32.totalorder %s16, 1
    %p39 = por %p37, %p38
    %p41 = scmp.ne.s32.totalorder %s24, %s40
    %p42 = scmp.eq.s32.totalorder %s16, 0
    %p43 = por %p41, %p42
    %s45 = sadd.s32 %s44, 1
    %p48 = scmp.eq.s32.totalorder %s10, 1
    %p49 = scmp.ne.s32.totalorder %s44, %s46
    %p50 = scmp.eq.s32.totalorder %s10, 0
    %p51 = por %p49, %p50
    %p52 = scmp.ne.s32.totalorder %s44, %s46
    %p53 = scmp.eq.s32.totalorder %s15, 1
    %p54 = por %p52, %p53
    %p55 = scmp.ne.s32.totalorder %s46, %s47
    %p56 = scmp.eq.s32.totalorder %s15, 0
    %p57 = por %p55, %p56
    %p58 = scmp.ne.s32.totalorder %s46, %s47
    %p59 = scmp.eq.s32.totalorder %s16, 1
    %p60 = por %p58, %p59
    %p62 = scmp.ne.s32.totalorder %s47, %s61
    %p63 = scmp.eq.s32.totalorder %s16, 0
    %p64 = por %p62, %p63
    %s66 = sadd.s32 %s65, 1
    %p69 = scmp.eq.s32.totalorder %s10, 1
    %p70 = scmp.ne.s32.totalorder %s65, %s67
    %p71 = scmp.eq.s32.totalorder %s10, 0
    %p72 = por %p70, %p71
    %p73 = scmp.ne.s32.totalorder %s65, %s67
    %p74 = scmp.eq.s32.totalorder %s15, 1
    %p75 = por %p73, %p74
    %p76 = scmp.ne.s32.totalorder %s67, %s68
    %p77 = scmp.eq.s32.totalorder %s15, 0
    %p78 = por %p76, %p77
    %p79 = scmp.ne.s32.totalorder %s67, %s68
    %p80 = scmp.eq.s32.totalorder %s16, 1
    %p81 = por %p79, %p80
    %p83 = scmp.ne.s32.totalorder %s68, %s82
    %p84 = scmp.eq.s32.totalorder %s16, 0
    %p85 = por %p83, %p84
    %s87 = sadd.s32 %s86, 1
    %p90 = scmp.eq.s32.totalorder %s10, 1
    %p91 = scmp.ne.s32.totalorder %s86, %s88
    %p92 = scmp.eq.s32.totalorder %s10, 0
    %p93 = por %p91, %p92
    %p94 = scmp.ne.s32.totalorder %s86, %s88
    %p95 = scmp.eq.s32.totalorder %s15, 1
    %p96 = por %p94, %p95
    %p97 = scmp.ne.s32.totalorder %s88, %s89
    %p98 = scmp.eq.s32.totalorder %s15, 0
    %p99 = por %p97, %p98
    %p100 = scmp.ne.s32.totalorder %s88, %s89
    %p101 = scmp.eq.s32.totalorder %s16, 1
    %p102 = por %p100, %p101
    %p104 = scmp.ne.s32.totalorder %s89, %s103
    %p105 = scmp.eq.s32.totalorder %s16, 0
    %p106 = por %p104, %p105
    %s107 = ssub.s32 %s10, %s17
    %p108 = scmp.eq.s32.totalorder %s107, 0
    %s110 = sadd.s32 %s109, 1
    %s111 = scalar_select %p108, %s109, %s110
    %p114 = pneg %p108
    %p115 = scmp.eq.s32.totalorder %s10, 1
    %p116 = por %p114, %p115
    %p117 = scmp.ne.s32.totalorder %s109, %s112
    %p118 = scmp.eq.s32.totalorder %s10, 0
    %p119 = por %p117, %p118
    %p120 = scmp.ne.s32.totalorder %s109, %s112
    %p121 = scmp.eq.s32.totalorder %s15, 1
    %p122 = por %p120, %p121
    %p123 = scmp.ne.s32.totalorder %s112, %s113
    %p124 = scmp.eq.s32.totalorder %s15, 0
    %p125 = por %p123, %p124
    %p126 = scmp.ne.s32.totalorder %s112, %s113
    %p127 = scmp.eq.s32.totalorder %s16, 1
    %p128 = por %p126, %p127
    %p130 = scmp.ne.s32.totalorder %s113, %s129
    %p131 = scmp.eq.s32.totalorder %s16, 0
    %p132 = por %p130, %p131
    %p133 = scmp.le.s32.totalorder 1, %s10
    %p134 = scmp.lt.s32.totalorder %s10, 3
    %p135 = pnand %p133, %p134
    %p136 = pneg %p135
    // Predicated region
    $region9: #{model_forward.1} parent=5 // pred_check
      _
    $region10: #{model_forward.1} parent=5 // pred_check_branch
      %138 = sbr.rel (%p135) target = $region12
    $region11: #{model_forward.1} parent=5 // pred_region
      %s139 = ssub.s32 %s10, 1
      // Predicated region
      $region13: #{model_forward.1} parent=11 // pred_check
        %p140 = pneg %p57
      $region14: #{model_forward.1} parent=11 // pred_check_branch
        %142 = sbr.rel (%p140) target = $region16
      $region15: #{model_forward.1} parent=11 // pred_region
        _
      $region16: #{model_forward.1} parent=11 // pred_fallthru
        _
      // Predicated region
      $region17: #{model_forward.1} parent=11 // pred_check
        %p143 = pneg %p78
      $region18: #{model_forward.1} parent=11 // pred_check_branch
        %145 = sbr.rel (%p143) target = $region20
      $region19: #{model_forward.1} parent=11 // pred_region
        _
      $region20: #{model_forward.1} parent=11 // pred_fallthru
        _
      // Predicated region
      $region21: #{model_forward.1} parent=11 // pred_check
        %p146 = pneg %p99
      $region22: #{model_forward.1} parent=11 // pred_check_branch
        %148 = sbr.rel (%p146) target = $region24
      $region23: #{model_forward.1} parent=11 // pred_region
        _
      $region24: #{model_forward.1} parent=11 // pred_fallthru
        _
    $region12: #{model_forward.1} parent=5 // pred_fallthru
      _
    %p149 = scmp.lt.s32.totalorder %s10, 2
    // Predicated region
    $region25: #{model_forward.1} parent=5 // pred_check
      %p150 = pneg %p149
    $region26: #{model_forward.1} parent=5 // pred_check_branch
      %152 = sbr.rel (%p150) target = $region28
    $region27: #{model_forward.1} parent=5 // pred_region
      // Predicated region
      $region29: #{model_forward.1} parent=27 // pred_check
        %p153 = pneg %p30
      $region30: #{model_forward.1} parent=27 // pred_check_branch
        %155 = sbr.rel (%p153) target = $region32
      $region31: #{model_forward.1} parent=27 // pred_region
        %s156 = smul.u32 32, %s10
        %p157 = scmp.lt.s32.totalorder %s156, 63
        %s158 = scalar_select %p157, %s156, 63
        %s159 = smul.addr %s158, 4
        %s160 = scalar_lea.vmem %s0, %s159
        %s161 = smul.u32 32, %s10
      $region32: #{model_forward.1} parent=27 // pred_fallthru
        _
    $region28: #{model_forward.1} parent=5 // pred_fallthru
      _
    %p162 = scmp.le.s32.totalorder 1, %s10
    %p163 = scmp.lt.s32.totalorder %s10, 3
    %p164 = pnand %p162, %p163
    %p165 = pneg %p164
    // Predicated region
    $region33: #{model_forward.1} parent=5 // pred_check
      _
    $region34: #{model_forward.1} parent=5 // pred_check_branch
      %167 = sbr.rel (%p164) target = $region36
    $region35: #{model_forward.1} parent=5 // pred_region
      %s168 = ssub.s32 %s10, 1
      %s169 = smul.u32 32, %s15
      %p170 = scmp.lt.s32.totalorder %s169, 63
      %s171 = scalar_select %p170, %s169, 63
      %s172 = smul.addr %s171, 4
      %s173 = scalar_lea.vmem %s0, %s172
      %p174 = pneg %p36
      %p175 = pneg %p33
      %p176 = pneg %p57
      %p177 = pneg %p54
      %p178 = pneg %p78
      %p179 = pneg %p75
      %p180 = pneg %p99
      %p181 = pneg %p96
      %p182 = pneg %p125
      %p183 = pneg %p122
      %p184 = scmp.lt.s32.totalorder %s15, 1
      %s185 = scalar_select %p184, %s15, 1
      %s186 = smul.addr %s185, 8
      %s187 = scalar_lea.vmem %s4, %s186
      %s188 = smul.u32 32, %s15
      %p189 = scmp.lt.s32.totalorder %s188, 63
      %s190 = scalar_select %p189, %s188, 63
      %s191 = smul.addr %s190, 4
      %s192 = scalar_lea.vmem %s0, %s191
      %s193 = smul.u32 32, %s15
      %p194 = scmp.lt.s32.totalorder %s15, 1
      %s195 = scalar_select %p194, %s15, 1
      %s196 = smul.addr %s195, 8
      %s197 = scalar_lea.vmem %s4, %s196
      %v199 = vld [vmem:[%s192] sm:$0xf]
      %v200 = vld [vmem:[%s192 + $0x4] sm:$0xf]
      %v201 = vld [vmem:[%s192 + $0x8] sm:$0xf]
      %v202 = vld [vmem:[%s192 + $0xc] sm:$0xf]
      %v203 = vld [vmem:[%s192 + $0x10] sm:$0xf]
      %v204 = vld [vmem:[%s192 + $0x14] sm:$0xf]
      %v205 = vld [vmem:[%s192 + $0x18] sm:$0xf]
      %v206 = vld [vmem:[%s192 + $0x1c] sm:$0xf]
      %v207 = vld [vmem:[%s192 + $0x20] sm:$0xf]
      %v208 = vld [vmem:[%s192 + $0x24] sm:$0xf]
      %v209 = vld [vmem:[%s192 + $0x28] sm:$0xf]
      %v210 = vld [vmem:[%s192 + $0x2c] sm:$0xf]
      %v211 = vld [vmem:[%s192 + $0x30] sm:$0xf]
      %v212 = vld [vmem:[%s192 + $0x34] sm:$0xf]
      %v213 = vld [vmem:[%s192 + $0x38] sm:$0xf]
      %v214 = vld [vmem:[%s192 + $0x3c] sm:$0xf]
      %v215 = vld [vmem:[%s192 + $0x40] sm:$0xf]
      %v216 = vld [vmem:[%s192 + $0x44] sm:$0xf]
      %v217 = vld [vmem:[%s192 + $0x48] sm:$0xf]
      %v218 = vld [vmem:[%s192 + $0x4c] sm:$0xf]
      %v219 = vld [vmem:[%s192 + $0x50] sm:$0xf]
      %v220 = vld [vmem:[%s192 + $0x54] sm:$0xf]
      %v221 = vld [vmem:[%s192 + $0x58] sm:$0xf]
      %v222 = vld [vmem:[%s192 + $0x5c] sm:$0xf]
      %v223 = vld [vmem:[%s192 + $0x60] sm:$0xf]
      %v224 = vld [vmem:[%s192 + $0x64] sm:$0xf]
      %v225 = vld [vmem:[%s192 + $0x68] sm:$0xf]
      %v226 = vld [vmem:[%s192 + $0x6c] sm:$0xf]
      %v227 = vld [vmem:[%s192 + $0x70] sm:$0xf]
      %v228 = vld [vmem:[%s192 + $0x74] sm:$0xf]
      %v229 = vld [vmem:[%s192 + $0x78] sm:$0xf]
      %v230 = vld [vmem:[%s192 + $0x7c] sm:$0xf]
      %v231 = vld [vmem:[%s1] sm:$0xf]
      %v232 = vld [vmem:[%s1 + $0x4] sm:$0xf]
      %v233 = vld [vmem:[%s1 + $0x8] sm:$0xf]
      %v234 = vld [vmem:[%s1 + $0xc] sm:$0xf]
      %v235 = vld [vmem:[%s1 + $0x10] sm:$0xf]
      %v236 = vld [vmem:[%s1 + $0x14] sm:$0xf]
      %v237 = vld [vmem:[%s1 + $0x18] sm:$0xf]
      %v238 = vld [vmem:[%s1 + $0x1c] sm:$0xf]
      %v239 = vld [vmem:[%s1 + $0x20] sm:$0xf]
      %v240 = vld [vmem:[%s1 + $0x24] sm:$0xf]
      %v241 = vld [vmem:[%s1 + $0x28] sm:$0xf]
      %v242 = vld [vmem:[%s1 + $0x2c] sm:$0xf]
      %v243 = vld [vmem:[%s1 + $0x30] sm:$0xf]
      %v244 = vld [vmem:[%s1 + $0x34] sm:$0xf]
      %v245 = vld [vmem:[%s1 + $0x38] sm:$0xf]
      %v246 = vld [vmem:[%s1 + $0x3c] sm:$0xf]
      %v279 = vunpack.c.l.b16 %v199
      %v280 = vunpack.c.l.b16 %v200
      %v281 = vunpack.c.l.b16 %v201
      %v282 = vunpack.c.l.b16 %v202
      %v283 = vunpack.c.l.b16 %v203
      %v284 = vunpack.c.l.b16 %v204
      %v285 = vunpack.c.l.b16 %v205
      %v286 = vunpack.c.l.b16 %v206
      %v287 = vunpack.c.l.b16 %v207
      %v288 = vunpack.c.l.b16 %v208
      %v289 = vunpack.c.l.b16 %v209
      %v290 = vunpack.c.l.b16 %v210
      %v291 = vunpack.c.l.b16 %v211
      %v292 = vunpack.c.l.b16 %v212
      %v293 = vunpack.c.l.b16 %v213
      %v294 = vunpack.c.l.b16 %v214
      %v295 = vunpack.c.l.b16 %v215
      %v296 = vunpack.c.l.b16 %v216
      %v297 = vunpack.c.l.b16 %v217
      %v298 = vunpack.c.l.b16 %v218
      %v299 = vunpack.c.l.b16 %v219
      %v300 = vunpack.c.l.b16 %v220
      %v301 = vunpack.c.l.b16 %v221
      %v302 = vunpack.c.l.b16 %v222
      %v303 = vunpack.c.l.b16 %v223
      %v304 = vunpack.c.l.b16 %v224
      %v305 = vunpack.c.l.b16 %v225
      %v306 = vunpack.c.l.b16 %v226
      %v307 = vunpack.c.l.b16 %v227
      %v308 = vunpack.c.l.b16 %v228
      %v309 = vunpack.c.l.b16 %v229
      %v310 = vunpack.c.l.b16 %v230
      %v311 = vpack.c.b16 %v280, %v279
      %v312 = vpack.c.b16 %v282, %v281
      %v313 = vpack.c.b16 %v284, %v283
      %v314 = vpack.c.b16 %v286, %v285
      %v315 = vpack.c.b16 %v288, %v287
      %v316 = vpack.c.b16 %v290, %v289
      %v317 = vpack.c.b16 %v292, %v291
      %v318 = vpack.c.b16 %v294, %v293
      %v319 = vpack.c.b16 %v296, %v295
      %v320 = vpack.c.b16 %v298, %v297
      %v321 = vpack.c.b16 %v300, %v299
      %v322 = vpack.c.b16 %v302, %v301
      %v323 = vpack.c.b16 %v304, %v303
      %v324 = vpack.c.b16 %v306, %v305
      %v325 = vpack.c.b16 %v308, %v307
      %v326 = vpack.c.b16 %v310, %v309
      %v359 = vunpack.c.l.b16 %v231
      %v360 = vunpack.c.l.b16 %v232
      %v361 = vunpack.c.l.b16 %v233
      %v362 = vunpack.c.l.b16 %v234
      %v363 = vunpack.c.l.b16 %v235
      %v364 = vunpack.c.l.b16 %v236
      %v365 = vunpack.c.l.b16 %v237
      %v366 = vunpack.c.l.b16 %v238
      %v367 = vunpack.c.l.b16 %v239
      %v368 = vunpack.c.l.b16 %v240
      %v369 = vunpack.c.l.b16 %v241
      %v370 = vunpack.c.l.b16 %v242
      %v371 = vunpack.c.l.b16 %v243
      %v372 = vunpack.c.l.b16 %v244
      %v373 = vunpack.c.l.b16 %v245
      %v374 = vunpack.c.l.b16 %v246
      %v375 = vpack.c.b16 %v360, %v359
      %v376 = vpack.c.b16 %v362, %v361
      %v377 = vpack.c.b16 %v364, %v363
      %v378 = vpack.c.b16 %v366, %v365
      %v379 = vpack.c.b16 %v368, %v367
      %v380 = vpack.c.b16 %v370, %v369
      %v381 = vpack.c.b16 %v372, %v371
      %v382 = vpack.c.b16 %v374, %v373
      %391 = vmatprep.subr.bf16.mxu0 0
      %392 = vmatpush1.bf16.msra.mxu0 %v382
      %393 = vmatprep.subr.bf16.mxu0 0
      %394 = vmatpush1.bf16.msra.mxu0 %v381
      %395 = vmatprep.subr.bf16.mxu0 0
      %396 = vmatpush1.bf16.msra.mxu0 %v380
      %397 = vmatprep.subr.bf16.mxu0 0
      %398 = vmatpush1.bf16.msra.mxu0 %v379
      %399 = vmatprep.subr.bf16.mxu0 0
      %400 = vmatpush1.bf16.msra.mxu0 %v378
      %401 = vmatprep.subr.bf16.mxu0 0
      %402 = vmatpush1.bf16.msra.mxu0 %v377
      %403 = vmatprep.subr.bf16.mxu0 0
      %404 = vmatpush1.bf16.msra.mxu0 %v376
      %405 = vmatprep.subr.bf16.mxu0 0
      %406 = vmatpush1.bf16.msra.mxu0 %v375
      %407 = vmatprep.subr.bf16.mxu0 0
      %408 = vmatpush2.bf16.msra.mxu0 0
      %409 = vmatprep.subr.bf16.mxu0 0
      %410 = vmatpush2.bf16.msra.mxu0 0
      %411 = vmatprep.subr.bf16.mxu0 0
      %412 = vmatpush2.bf16.msra.mxu0 0
      %413 = vmatprep.subr.bf16.mxu0 0
      %414 = vmatpush2.bf16.msra.mxu0 0
      %415 = vmatprep.subr.bf16.mxu0 0
      %416 = vmatpush2.bf16.msra.mxu0 0
      %417 = vmatprep.subr.bf16.mxu0 0
      %418 = vmatpush2.bf16.msra.mxu0 0
      %419 = vmatprep.subr.bf16.mxu0 0
      %420 = vmatpush2.bf16.msra.mxu0 0
      %421 = vmatprep.subr.bf16.mxu0 0
      %422 = vmatpush2.bf16.msra.mxu0 0
      %423 = vmatprep.mubr.bf16.mxu0 0
      %424 = vmatmul.mubr.bf16.gmra.mxu0 %v311
      %v425 = vpop.f32.mrf.mxu0
      %v426 = vadd.f32 0.0, %v425
      %v427 = vpop.f32.mrf.mxu0
      %v428 = vpop.f32.mrf.mxu0
      %v429 = vadd.f32 0.0, %v428
      %v430 = vpop.f32.mrf.mxu0
      %431 = vmatprep.mubr.bf16.mxu0 0
      %432 = vmatmul.mubr.bf16.gmra.mxu0 %v312
      %v433 = vpop.f32.mrf.mxu0
      %v434 = vadd.f32 0.0, %v433
      %v435 = vpop.f32.mrf.mxu0
      %v436 = vpop.f32.mrf.mxu0
      %v437 = vadd.f32 0.0, %v436
      %v438 = vpop.f32.mrf.mxu0
      %439 = vmatprep.mubr.bf16.mxu0 0
      %440 = vmatmul.mubr.bf16.gmra.mxu0 %v313
      %v441 = vpop.f32.mrf.mxu0
      %v442 = vadd.f32 0.0, %v441
      %v443 = vpop.f32.mrf.mxu0
      %v444 = vpop.f32.mrf.mxu0
      %v445 = vadd.f32 0.0, %v444
      %v446 = vpop.f32.mrf.mxu0
      %447 = vmatprep.mubr.bf16.mxu0 0
      %448 = vmatmul.mubr.bf16.gmra.mxu0 %v314
      %v449 = vpop.f32.mrf.mxu0
      %v450 = vadd.f32 0.0, %v449
      %v451 = vpop.f32.mrf.mxu0
      %v452 = vpop.f32.mrf.mxu0
      %v453 = vadd.f32 0.0, %v452
      %v454 = vpop.f32.mrf.mxu0
      %455 = vmatprep.mubr.bf16.mxu0 0
      %456 = vmatmul.mubr.bf16.gmra.mxu0 %v315
      %v457 = vpop.f32.mrf.mxu0
      %v458 = vadd.f32 0.0, %v457
      %v459 = vpop.f32.mrf.mxu0
      %v460 = vpop.f32.mrf.mxu0
      %v461 = vadd.f32 0.0, %v460
      %v462 = vpop.f32.mrf.mxu0
      %463 = vmatprep.mubr.bf16.mxu0 0
      %464 = vmatmul.mubr.bf16.gmra.mxu0 %v316
      %v465 = vpop.f32.mrf.mxu0
      %v466 = vadd.f32 0.0, %v465
      %v467 = vpop.f32.mrf.mxu0
      %v468 = vpop.f32.mrf.mxu0
      %v469 = vadd.f32 0.0, %v468
      %v470 = vpop.f32.mrf.mxu0
      %471 = vmatprep.mubr.bf16.mxu0 0
      %472 = vmatmul.mubr.bf16.gmra.mxu0 %v317
      %v473 = vpop.f32.mrf.mxu0
      %v474 = vadd.f32 0.0, %v473
      %v475 = vpop.f32.mrf.mxu0
      %v476 = vpop.f32.mrf.mxu0
      %v477 = vadd.f32 0.0, %v476
      %v478 = vpop.f32.mrf.mxu0
      %479 = vmatprep.mubr.bf16.mxu0 0
      %480 = vmatmul.mubr.bf16.gmra.mxu0 %v318
      %v481 = vpop.f32.mrf.mxu0
      %v482 = vadd.f32 0.0, %v481
      %v483 = vpop.f32.mrf.mxu0
      %v484 = vpop.f32.mrf.mxu0
      %v485 = vadd.f32 0.0, %v484
      %v486 = vpop.f32.mrf.mxu0
      %487 = vmatprep.mubr.bf16.mxu0 0
      %488 = vmatmul.mubr.bf16.gmra.mxu0 %v319
      %v489 = vpop.f32.mrf.mxu0
      %v490 = vadd.f32 0.0, %v489
      %v491 = vpop.f32.mrf.mxu0
      %v492 = vpop.f32.mrf.mxu0
      %v493 = vadd.f32 0.0, %v492
      %v494 = vpop.f32.mrf.mxu0
      %495 = vmatprep.mubr.bf16.mxu0 0
      %496 = vmatmul.mubr.bf16.gmra.mxu0 %v320
      %v497 = vpop.f32.mrf.mxu0
      %v498 = vadd.f32 0.0, %v497
      %v499 = vpop.f32.mrf.mxu0
      %v500 = vpop.f32.mrf.mxu0
      %v501 = vadd.f32 0.0, %v500
      %v502 = vpop.f32.mrf.mxu0
      %503 = vmatprep.mubr.bf16.mxu0 0
      %504 = vmatmul.mubr.bf16.gmra.mxu0 %v321
      %v505 = vpop.f32.mrf.mxu0
      %v506 = vadd.f32 0.0, %v505
      %v507 = vpop.f32.mrf.mxu0
      %v508 = vpop.f32.mrf.mxu0
      %v509 = vadd.f32 0.0, %v508
      %v510 = vpop.f32.mrf.mxu0
      %511 = vmatprep.mubr.bf16.mxu0 0
      %512 = vmatmul.mubr.bf16.gmra.mxu0 %v322
      %v513 = vpop.f32.mrf.mxu0
      %v514 = vadd.f32 0.0, %v513
      %v515 = vpop.f32.mrf.mxu0
      %v516 = vpop.f32.mrf.mxu0
      %v517 = vadd.f32 0.0, %v516
      %v518 = vpop.f32.mrf.mxu0
      %519 = vmatprep.mubr.bf16.mxu0 0
      %520 = vmatmul.mubr.bf16.gmra.mxu0 %v323
      %v521 = vpop.f32.mrf.mxu0
      %v522 = vadd.f32 0.0, %v521
      %v523 = vpop.f32.mrf.mxu0
      %v524 = vpop.f32.mrf.mxu0
      %v525 = vadd.f32 0.0, %v524
      %v526 = vpop.f32.mrf.mxu0
      %527 = vmatprep.mubr.bf16.mxu0 0
      %528 = vmatmul.mubr.bf16.gmra.mxu0 %v324
      %v529 = vpop.f32.mrf.mxu0
      %v530 = vadd.f32 0.0, %v529
      %v531 = vpop.f32.mrf.mxu0
      %v532 = vpop.f32.mrf.mxu0
      %v533 = vadd.f32 0.0, %v532
      %v534 = vpop.f32.mrf.mxu0
      %535 = vmatprep.mubr.bf16.mxu0 0
      %536 = vmatmul.mubr.bf16.gmra.mxu0 %v325
      %v537 = vpop.f32.mrf.mxu0
      %v538 = vadd.f32 0.0, %v537
      %v539 = vpop.f32.mrf.mxu0
      %v540 = vpop.f32.mrf.mxu0
      %v541 = vadd.f32 0.0, %v540
      %v542 = vpop.f32.mrf.mxu0
      %543 = vmatprep.mubr.bf16.mxu0 0
      %544 = vmatmul.mubr.bf16.gmra.mxu0 %v326
      %v545 = vpop.f32.mrf.mxu0
      %v546 = vadd.f32 0.0, %v545
      %v547 = vpop.f32.mrf.mxu0
      %v548 = vpop.f32.mrf.mxu0
      %v549 = vadd.f32 0.0, %v548
      %v550 = vpop.f32.mrf.mxu0
      %551 = vdwg.mxu0
      %v552 = vmax.f32 %v426, 0.0
      %v553 = vmax.f32 %v429, 0.0
      %v554 = vmax.f32 %v434, 0.0
      %v555 = vmax.f32 %v437, 0.0
      %v556 = vmax.f32 %v442, 0.0
      %v557 = vmax.f32 %v445, 0.0
      %v558 = vmax.f32 %v450, 0.0
      %v559 = vmax.f32 %v453, 0.0
      %v560 = vmax.f32 %v458, 0.0
      %v561 = vmax.f32 %v461, 0.0
      %v562 = vmax.f32 %v466, 0.0
      %v563 = vmax.f32 %v469, 0.0
      %v564 = vmax.f32 %v474, 0.0
      %v565 = vmax.f32 %v477, 0.0
      %v566 = vmax.f32 %v482, 0.0
      %v567 = vmax.f32 %v485, 0.0
      %v568 = vmax.f32 %v490, 0.0
      %v569 = vmax.f32 %v493, 0.0
      %v570 = vmax.f32 %v498, 0.0
      %v571 = vmax.f32 %v501, 0.0
      %v572 = vmax.f32 %v506, 0.0
      %v573 = vmax.f32 %v509, 0.0
      %v574 = vmax.f32 %v514, 0.0
      %v575 = vmax.f32 %v517, 0.0
      %v576 = vmax.f32 %v522, 0.0
      %v577 = vmax.f32 %v525, 0.0
      %v578 = vmax.f32 %v530, 0.0
      %v579 = vmax.f32 %v533, 0.0
      %v580 = vmax.f32 %v538, 0.0
      %v581 = vmax.f32 %v541, 0.0
      %v582 = vmax.f32 %v546, 0.0
      %v583 = vmax.f32 %v549, 0.0
      %v584 = vadd.f32 %v552, %v553
      %v585 = vadd.f32 %v584, %v554
      %v586 = vadd.f32 %v585, %v555
      %v587 = vadd.f32 %v586, %v556
      %v588 = vadd.f32 %v587, %v557
      %v589 = vadd.f32 %v588, %v558
      %v590 = vadd.f32 %v589, %v559
      %v591 = vadd.f32 %v590, %v560
      %v592 = vadd.f32 %v591, %v561
      %v593 = vadd.f32 %v592, %v562
      %v594 = vadd.f32 %v593, %v563
      %v595 = vadd.f32 %v594, %v564
      %v596 = vadd.f32 %v595, %v565
      %v597 = vadd.f32 %v596, %v566
      %v598 = vadd.f32 %v597, %v567
      %v599 = vadd.f32 %v598, %v568
      %v600 = vadd.f32 %v599, %v569
      %v601 = vadd.f32 %v600, %v570
      %v602 = vadd.f32 %v601, %v571
      %v603 = vadd.f32 %v602, %v572
      %v604 = vadd.f32 %v603, %v573
      %v605 = vadd.f32 %v604, %v574
      %v606 = vadd.f32 %v605, %v575
      %v607 = vadd.f32 %v606, %v576
      %v608 = vadd.f32 %v607, %v577
      %v609 = vadd.f32 %v608, %v578
      %v610 = vadd.f32 %v609, %v579
      %v611 = vadd.f32 %v610, %v580
      %v612 = vadd.f32 %v611, %v581
      %v613 = vadd.f32 %v612, %v582
      %v614 = vadd.f32 %v613, %v583
      %v615 = vrot.slane %v614, 4
      %v616 = vadd.f32 %v614, %v615
      %v617 = vrot.slane %v616, 2
      %v618 = vadd.f32 %v616, %v617
      %v619 = vrot.slane %v618, 1
      %v620 = vadd.f32 %v618, %v619
      %v621 = vmul.f32 %v620, 0.00390625
      %v622 = vpack.c.bf16 %v621, %v621
      %v623 = vld [vmem:[%s2] sm:$0xf]
      %v624 = vld [vmem:[%s2 + $0x4] sm:$0xf]
      %v625 = vld [vmem:[%s2 + $0x8] sm:$0xf]
      %v626 = vld [vmem:[%s2 + $0xc] sm:$0xf]
      %v627 = vld [vmem:[%s2 + $0x10] sm:$0xf]
      %v628 = vld [vmem:[%s2 + $0x14] sm:$0xf]
      %v629 = vld [vmem:[%s2 + $0x18] sm:$0xf]
      %v630 = vld [vmem:[%s2 + $0x1c] sm:$0xf]
      %v631 = vld [vmem:[%s2 + $0x20] sm:$0xf]
      %v632 = vld [vmem:[%s2 + $0x24] sm:$0xf]
      %v633 = vld [vmem:[%s2 + $0x28] sm:$0xf]
      %v634 = vld [vmem:[%s2 + $0x2c] sm:$0xf]
      %v635 = vld [vmem:[%s2 + $0x30] sm:$0xf]
      %v636 = vld [vmem:[%s2 + $0x34] sm:$0xf]
      %v637 = vld [vmem:[%s2 + $0x38] sm:$0xf]
      %v638 = vld [vmem:[%s2 + $0x3c] sm:$0xf]
      %v639 = vld [vmem:[%s3] sm:$0x1]
      %v656 = vunpack.c.l.b16 %v623
      %v657 = vunpack.c.l.b16 %v624
      %v658 = vunpack.c.l.b16 %v625
      %v659 = vunpack.c.l.b16 %v626
      %v660 = vunpack.c.l.b16 %v627
      %v661 = vunpack.c.l.b16 %v628
      %v662 = vunpack.c.l.b16 %v629
      %v663 = vunpack.c.l.b16 %v630
      %v664 = vunpack.c.l.b16 %v631
      %v665 = vunpack.c.l.b16 %v632
      %v666 = vunpack.c.l.b16 %v633
      %v667 = vunpack.c.l.b16 %v634
      %v668 = vunpack.c.l.b16 %v635
      %v669 = vunpack.c.l.b16 %v636
      %v670 = vunpack.c.l.b16 %v637
      %v671 = vunpack.c.l.b16 %v638
      %v672 = vpack.c.b16 %v657, %v656
      %v673 = vpack.c.b16 %v659, %v658
      %v674 = vpack.c.b16 %v661, %v660
      %v675 = vpack.c.b16 %v663, %v662
      %v676 = vpack.c.b16 %v665, %v664
      %v677 = vpack.c.b16 %v667, %v666
      %v678 = vpack.c.b16 %v669, %v668
      %v679 = vpack.c.b16 %v671, %v670
      %688 = vmatprep.subr.bf16.mxu0 0
      %689 = vmatpush1.bf16.msra.mxu0 %v679
      %690 = vmatprep.subr.bf16.mxu0 0
      %691 = vmatpush1.bf16.msra.mxu0 %v678
      %692 = vmatprep.subr.bf16.mxu0 0
      %693 = vmatpush1.bf16.msra.mxu0 %v677
      %694 = vmatprep.subr.bf16.mxu0 0
      %695 = vmatpush1.bf16.msra.mxu0 %v676
      %696 = vmatprep.subr.bf16.mxu0 0
      %697 = vmatpush1.bf16.msra.mxu0 %v675
      %698 = vmatprep.subr.bf16.mxu0 0
      %699 = vmatpush1.bf16.msra.mxu0 %v674
      %700 = vmatprep.subr.bf16.mxu0 0
      %701 = vmatpush1.bf16.msra.mxu0 %v673
      %702 = vmatprep.subr.bf16.mxu0 0
      %703 = vmatpush1.bf16.msra.mxu0 %v672
      %704 = vmatprep.subr.bf16.mxu0 0
      %705 = vmatpush2.bf16.msra.mxu0 0
      %706 = vmatprep.subr.bf16.mxu0 0
      %707 = vmatpush2.bf16.msra.mxu0 0
      %708 = vmatprep.subr.bf16.mxu0 0
      %709 = vmatpush2.bf16.msra.mxu0 0
      %710 = vmatprep.subr.bf16.mxu0 0
      %711 = vmatpush2.bf16.msra.mxu0 0
      %712 = vmatprep.subr.bf16.mxu0 0
      %713 = vmatpush2.bf16.msra.mxu0 0
      %714 = vmatprep.subr.bf16.mxu0 0
      %715 = vmatpush2.bf16.msra.mxu0 0
      %716 = vmatprep.subr.bf16.mxu0 0
      %717 = vmatpush2.bf16.msra.mxu0 0
      %718 = vmatprep.subr.bf16.mxu0 0
      %719 = vmatpush2.bf16.msra.mxu0 0
      %720 = vmatprep.mubr.bf16.mxu0 0
      %721 = vmatmul.mubr.bf16.gmra.mxu0 %v622
      %v722 = vpop.f32.mrf.mxu0
      %v723 = vadd.f32 %v639, %v722
      %v724 = vpop.f32.mrf.mxu0
      %v725 = vpop.f32.mrf.mxu0
      %v726 = vpop.f32.mrf.mxu0
      %727 = vdwg.mxu0
      %v728 = vlaneseq
      %v729 = vshrl.u32 %v728, 7
      %v730 = vsub.s32 0, %v729
      %v731 = vrot.slane %v723, %v730
      %732 = vst [vmem:[%s197] sm:$0xff] %v731
      %p733 = scmp.lt.s32.totalorder %s15, 1
      %s734 = scalar_select %p733, %s15, 1
      %s735 = smul.addr %s734, 8
      %s736 = scalar_lea.vmem %s4, %s735
      // Predicated region
      $region37: #{model_forward.1} parent=35 // pred_check
        %p737 = pneg %p122
      $region38: #{model_forward.1} parent=35 // pred_check_branch
        %739 = sbr.rel (%p737) target = $region40
      $region39: #{model_forward.1} parent=35 // pred_region
        _
      $region40: #{model_forward.1} parent=35 // pred_fallthru
        _
    $region36: #{model_forward.1} parent=5 // pred_fallthru
      _
    %p740 = scmp.le.s32.totalorder 2, %s10
    // Predicated region
    $region41: #{model_forward.1} parent=5 // pred_check
      %p741 = pneg %p740
    $region42: #{model_forward.1} parent=5 // pred_check_branch
      %743 = sbr.rel (%p741) target = $region44
    $region43: #{model_forward.1} parent=5 // pred_region
      %s744 = ssub.s32 %s10, 2
      // Predicated region
      $region45: #{model_forward.1} parent=43 // pred_check
        %p745 = pneg %p128
      $region46: #{model_forward.1} parent=43 // pred_check_branch
        %747 = sbr.rel (%p745) target = $region48
      $region47: #{model_forward.1} parent=43 // pred_region
        %p748 = scmp.lt.s32.totalorder %s16, 1
        %s749 = scalar_select %p748, %s16, 1
        %s750 = smul.addr %s749, 8
        %s751 = scalar_lea.vmem %s4, %s750
      $region48: #{model_forward.1} parent=43 // pred_fallthru
        _
    $region44: #{model_forward.1} parent=5 // pred_fallthru
      _
  $region6: #{model_forward.1} parent=0 // loop_footer
    %s14 = sadd.s32 1, %s10
  $region7: #{model_forward.1} parent=0 // loop_footer_branch
    %9 = sbr.rel target = $region3
  $region8: #{model_forward.1} parent=0 // loop_exit
    _

</llo_original>
